<compile_context>
chip_gen: v6e
topology: v6e:2x2x1
jax: 0.10.0
libtpu: 0.0.40
codegen_flags: <defaults>
</compile_context>

<pallas_src>
import jax
import jax.numpy as jnp
from jax import lax
from jax.experimental import pallas as pl
from jax.experimental.pallas import tpu as pltpu


# ---- packed-parameter layout: row offsets are multiples of 8 (sublane tile) ---
_L1_R, _L2_R, _L3_R, _L4_R, _L5_R = 0, 16, 40, 56, 64
_P_ROWS, _P_COLS, _BIAS_COL = 72, 128, 120

# ---- batch tiling knobs --------------------------------------------------------
_MAX_TILE_LANES = 4096   # largest lane tile per grid step (VMEM cost is trivial)
_CHUNK = 512             # in-kernel sub-chunk size: caps live activations ~15 vregs


def _policy_mlp_kernel(x_ref, p_ref, out_ref):
    """One batch tile of the full MLP.

    x_ref:   (4, b_tile)   observations, batch on the 128-lane axis
    p_ref:   (72, 128)     packed weights+biases (resident across grid steps)
    out_ref: (1, b_tile)   sigmoid probabilities (lane-dense stores)
    """
    # Static, 8-row-aligned slices of the packed parameter block (free views).
    w1 = p_ref[_L1_R:_L1_R + 10, 0:4]                         # (10, 4)
    b1 = p_ref[_L1_R:_L1_R + 10, _BIAS_COL:_BIAS_COL + 1]     # (10, 1)
    w2 = p_ref[_L2_R:_L2_R + 20, 0:10]                        # (20, 10)
    b2 = p_ref[_L2_R:_L2_R + 20, _BIAS_COL:_BIAS_COL + 1]     # (20, 1)
    w3 = p_ref[_L3_R:_L3_R + 10, 0:20]                        # (10, 20)
    b3 = p_ref[_L3_R:_L3_R + 10, _BIAS_COL:_BIAS_COL + 1]     # (10, 1)
    w4 = p_ref[_L4_R:_L4_R + 5, 0:10]                         # (5, 10)
    b4 = p_ref[_L4_R:_L4_R + 5, _BIAS_COL:_BIAS_COL + 1]      # (5, 1)
    w5c = p_ref[_L5_R:_L5_R + 5, 0:1]                         # (5, 1) == W5^T
    b5 = p_ref[_L5_R:_L5_R + 1, _BIAS_COL:_BIAS_COL + 1]      # (1, 1)

    def compute_chunk(start, size):
        x = x_ref[:, pl.ds(start, size)]                      # (4, size)
        # MXU matmuls with N = size (lane dense); biases broadcast over lanes.
        h = jnp.maximum(jnp.dot(w1, x, preferred_element_type=jnp.float32) + b1, 0.0)
        h = jnp.maximum(jnp.dot(w2, h, preferred_element_type=jnp.float32) + b2, 0.0)
        h = jnp.maximum(jnp.dot(w3, h, preferred_element_type=jnp.float32) + b3, 0.0)
        h = jnp.maximum(jnp.dot(w4, h, preferred_element_type=jnp.float32) + b4, 0.0)
        # Final (5 -> 1) layer on VPU + XLU: broadcast-multiply then sublane reduce.
        logits = jnp.sum(w5c * h, axis=0, keepdims=True) + b5                  # (1, size)
        # Exact sigmoid: exp on EUP + exact reciprocal; result is always in [0, 1].
        prob = pl.reciprocal(1.0 + jnp.exp(-logits), approx=False)
        out_ref[:, pl.ds(start, size)] = prob.astype(out_ref.dtype)

    b_tile = x_ref.shape[1]
    n_full, rem = divmod(b_tile, _CHUNK)

    if n_full > 0:
        def body(c, carry):
            compute_chunk(pl.multiple_of(c * _CHUNK, 128), _CHUNK)
            return carry
        lax.fori_loop(0, n_full, body, 0, unroll=True)
    if rem > 0:                                # static tail chunk (multiple of 128)
        compute_chunk(n_full * _CHUNK, rem)


def pack_policy_params(params):
    """Pack PyTorch-style (out,in) weights + (out,) biases into one (72,128) f32
    block.  Call once per parameter update and reuse across forward calls."""
    (w1, b1), (w2, b2), (w3, b3), (w4, b4), (w5, b5) = params
    p = jnp.zeros((_P_ROWS, _P_COLS), jnp.float32)

    def put(p, w, b, row):
        o, i = w.shape
        p = p.at[row:row + o, 0:i].set(w.astype(jnp.float32))
        p = p.at[row:row + o, _BIAS_COL].set(b.astype(jnp.float32))
        return p

    p = put(p, w1, b1, _L1_R)
    p = put(p, w2, b2, _L2_R)
    p = put(p, w3, b3, _L3_R)
    p = put(p, w4, b4, _L4_R)
    # Layer 5 stored transposed as a (5,1) column so the kernel's VPU FMA path
    # needs no in-kernel transpose; its scalar bias sits at (_L5_R, _BIAS_COL).
    p = p.at[_L5_R:_L5_R + 5, 0].set(w5[0, :].astype(jnp.float32))
    p = p.at[_L5_R, _BIAS_COL].set(b5[0].astype(jnp.float32))
    return p


def _round_up(n, m):
    return ((n + m - 1) // m) * m


def _best_tiling_for(b_pad):
    """Largest lane tile (multiple of 128, <= _MAX_TILE_LANES) dividing b_pad,
    preferring >= 2 grid steps (v7x megacore) when that costs at most 2x steps."""
    m = b_pad // 128
    max_k = _MAX_TILE_LANES // 128
    ks = [k for k in range(1, min(m, max_k) + 1) if m % k == 0]
    multi = [k for k in ks if m // k >= 2]
    k = max(multi) if (multi and 2 * max(multi) >= max(ks)) else max(ks)
    return 128 * k, m // k


def _choose_tiling(batch):
    """Pick (b_pad, b_tile, n_tiles); trade grid-step count vs. padding waste."""
    best = None
    for quantum in (128, 512, _MAX_TILE_LANES):
        b_pad = _round_up(max(batch, 1), quantum)
        tile, n = _best_tiling_for(b_pad)
        cand = (n, b_pad, tile)
        if best is None or cand[:2] < best[:2]:
            best = cand
    n_tiles, b_pad, b_tile = best
    return b_pad, b_tile, n_tiles


@jax.jit
def policy_forward(observation, packed_params):
    """observation: (B, 4) float32.  Returns prob of shape (B, 1) in [0, 1]."""
    B = observation.shape[0]
    b_pad, b_tile, n_tiles = _choose_tiling(B)

    # Transpose + pad fuse with the kernel launch under jit (single HBM copy).
    x = jnp.pad(observation.astype(jnp.float32).T, ((0, 0), (0, b_pad - B)))  # (4, b_pad)

    out = pl.pallas_call(
        _policy_mlp_kernel,
        out_shape=jax.ShapeDtypeStruct((1, b_pad), jnp.float32),
        grid=(n_tiles,),
        in_specs=[
            pl.BlockSpec((4, b_tile), lambda i: (0, i)),            # one batch tile
            pl.BlockSpec((_P_ROWS, _P_COLS), lambda i: (0, 0)),     # params: resident
        ],
        out_specs=pl.BlockSpec((1, b_tile), lambda i: (0, i)),      # lane-dense output
        compiler_params=pltpu.CompilerParams(
            dimension_semantics=("parallel",),                      # megacore on v7x
        ),
    )(x, packed_params)

    return out[0, :B].reshape(B, 1)


def _init_linear(key, out_features, in_features):
    """Deterministic init mimicking torch.nn.Linear defaults (kaiming-uniform)."""
    kw, kb = jax.random.split(key)
    bound = 1.0 / jnp.sqrt(jnp.float32(in_features))
    w = jax.random.uniform(kw, (out_features, in_features), jnp.float32,
                           minval=-bound, maxval=bound)
    b = jax.random.uniform(kb, (out_features,), jnp.float32,
                           minval=-bound, maxval=bound)
    return w, b


def init_policy_params(key):
    keys = jax.random.split(key, 5)
    dims = [(10, 4), (20, 10), (10, 20), (5, 10), (1, 5)]
    return tuple(_init_linear(k, o, i) for k, (o, i) in zip(keys, dims))


def _reference_forward(observation, params):
    """Plain-JAX reference (full-precision matmuls) for correctness checking."""
    (w1, b1), (w2, b2), (w3, b3), (w4, b4), (w5, b5) = params
    hp = jax.lax.Precision.HIGHEST
    h = observation.astype(jnp.float32)
    h = jnp.maximum(jnp.dot(h, w1.T, precision=hp) + b1, 0.0)
    h = jnp.maximum(jnp.dot(h, w2.T, precision=hp) + b2, 0.0)
    h = jnp.maximum(jnp.dot(h, w3.T, precision=hp) + b3, 0.0)
    h = jnp.maximum(jnp.dot(h, w4.T, precision=hp) + b4, 0.0)
    h = jnp.dot(h, w5.T, precision=hp) + b5
    return jax.nn.sigmoid(h)


if __name__ == "__main__":
    key = jax.random.PRNGKey(0)
    k_params, k_obs = jax.random.split(key)

    params = init_policy_params(k_params)
    packed = pack_policy_params(params)   # pack once, reuse across calls

    # Small batch of cartpole-style observations: (B, 4)
    B = 8
    observation = jax.random.normal(k_obs, (B, 4), dtype=jnp.float32)

    prob = jax.block_until_ready(policy_forward(observation, packed))
    assert prob.shape == (B, 1)

    # Mirror the module's assertion: probabilities must lie in [0, 1].
    assert bool(jnp.all((prob >= 0.0) & (prob <= 1.0))), (
        "prob should fall inside [0, 1], got: {}".format(prob))

    ref = _reference_forward(observation, params)
    assert bool(jnp.allclose(prob, ref, atol=1e-3, rtol=1e-3)), (
        "kernel output mismatch vs reference: {} vs {}".format(prob, ref))

    # A larger, awkward batch exercises the multi-chunk / padded-tile paths.
    B2 = 600
    obs2 = jax.random.normal(jax.random.PRNGKey(1), (B2, 4), dtype=jnp.float32)
    prob2 = jax.block_until_ready(policy_forward(obs2, packed))
    ref2 = _reference_forward(obs2, params)
    assert bool(jnp.all((prob2 >= 0.0) & (prob2 <= 1.0)))
    assert bool(jnp.allclose(prob2, ref2, atol=1e-3, rtol=1e-3)), (
        "large-batch kernel output mismatch vs reference")

    print("KERNEL_OK")
</pallas_src>

<mosaic_0001>
module attributes {stable_mosaic.version = 11 : i64} {
  func.func @_policy_mlp_kernel(%arg0: i32, %arg1: memref<4x128xf32, #tpu.memory_space<vmem>>, %arg2: memref<72x128xf32, #tpu.memory_space<vmem>>, %arg3: memref<1x128xf32, #tpu.memory_space<vmem>>) attributes {dimension_semantics = [#tpu.dimension_semantics<parallel>], iteration_bounds = array<i64: 1>, scalar_prefetch = 0 : i64, scratch_operands = 0 : i64, tpu.core_type = #tpu.core_type<tc>, window_params = [{transform_indices = @transform_0, window_bounds = array<i64: 4, 128>}, {pipeline_mode = #tpu.pipeline_mode<synchronous>, transform_indices = @transform_1, window_bounds = array<i64: 72, 128>}, {transform_indices = @transform_2, window_bounds = array<i64: 1, 128>}]} {
    %c0 = arith.constant 0 : index
    %c0_0 = arith.constant 0 : index
    %0 = vector.load %arg2[%c0, %c0_0] : memref<72x128xf32, #tpu.memory_space<vmem>>, vector<10x4xf32>
    %c0_1 = arith.constant 0 : index
    %c120 = arith.constant 120 : index
    %1 = vector.load %arg2[%c0_1, %c120] : memref<72x128xf32, #tpu.memory_space<vmem>>, vector<10x1xf32>
    %c16 = arith.constant 16 : index
    %c0_2 = arith.constant 0 : index
    %2 = vector.load %arg2[%c16, %c0_2] : memref<72x128xf32, #tpu.memory_space<vmem>>, vector<20x10xf32>
    %c16_3 = arith.constant 16 : index
    %c120_4 = arith.constant 120 : index
    %3 = vector.load %arg2[%c16_3, %c120_4] : memref<72x128xf32, #tpu.memory_space<vmem>>, vector<20x1xf32>
    %c40 = arith.constant 40 : index
    %c0_5 = arith.constant 0 : index
    %4 = vector.load %arg2[%c40, %c0_5] : memref<72x128xf32, #tpu.memory_space<vmem>>, vector<10x20xf32>
    %c40_6 = arith.constant 40 : index
    %c120_7 = arith.constant 120 : index
    %5 = vector.load %arg2[%c40_6, %c120_7] : memref<72x128xf32, #tpu.memory_space<vmem>>, vector<10x1xf32>
    %c56 = arith.constant 56 : index
    %c0_8 = arith.constant 0 : index
    %6 = vector.load %arg2[%c56, %c0_8] : memref<72x128xf32, #tpu.memory_space<vmem>>, vector<5x10xf32>
    %c56_9 = arith.constant 56 : index
    %c120_10 = arith.constant 120 : index
    %7 = vector.load %arg2[%c56_9, %c120_10] : memref<72x128xf32, #tpu.memory_space<vmem>>, vector<5x1xf32>
    %c64 = arith.constant 64 : index
    %c0_11 = arith.constant 0 : index
    %8 = vector.load %arg2[%c64, %c0_11] : memref<72x128xf32, #tpu.memory_space<vmem>>, vector<5x1xf32>
    %c64_12 = arith.constant 64 : index
    %c120_13 = arith.constant 120 : index
    %9 = vector.load %arg2[%c64_12, %c120_13] : memref<72x128xf32, #tpu.memory_space<vmem>>, vector<1x1xf32>
    %c0_14 = arith.constant 0 : index
    %c0_15 = arith.constant 0 : index
    %10 = vector.load %arg1[%c0_14, %c0_15] : memref<4x128xf32, #tpu.memory_space<vmem>>, vector<4x128xf32>
    %cst = arith.constant dense<0.000000e+00> : vector<10x128xf32>
    %11 = tpu.matmul %0, %10, %cst {dimension_numbers = #tpu.dot_dimension_numbers<[1], [0], [0], [1], [0, 0, 1, 1], [], []>} : vector<10x4xf32>, vector<4x128xf32>, vector<10x128xf32> -> vector<10x128xf32>
    %12 = vector.broadcast %1 : vector<10x1xf32> to vector<10x128xf32>
    %13 = arith.addf %11, %12 : vector<10x128xf32>
    %cst_16 = arith.constant 0.000000e+00 : f32
    %14 = vector.broadcast %cst_16 : f32 to vector<10x128xf32>
    %15 = arith.maximumf %13, %14 : vector<10x128xf32>
    %cst_17 = arith.constant dense<0.000000e+00> : vector<20x128xf32>
    %16 = tpu.matmul %2, %15, %cst_17 {dimension_numbers = #tpu.dot_dimension_numbers<[1], [0], [0], [1], [0, 0, 1, 1], [], []>} : vector<20x10xf32>, vector<10x128xf32>, vector<20x128xf32> -> vector<20x128xf32>
    %17 = vector.broadcast %3 : vector<20x1xf32> to vector<20x128xf32>
    %18 = arith.addf %16, %17 : vector<20x128xf32>
    %cst_18 = arith.constant 0.000000e+00 : f32
    %19 = vector.broadcast %cst_18 : f32 to vector<20x128xf32>
    %20 = arith.maximumf %18, %19 : vector<20x128xf32>
    %cst_19 = arith.constant dense<0.000000e+00> : vector<10x128xf32>
    %21 = tpu.matmul %4, %20, %cst_19 {dimension_numbers = #tpu.dot_dimension_numbers<[1], [0], [0], [1], [0, 0, 1, 1], [], []>} : vector<10x20xf32>, vector<20x128xf32>, vector<10x128xf32> -> vector<10x128xf32>
    %22 = vector.broadcast %5 : vector<10x1xf32> to vector<10x128xf32>
    %23 = arith.addf %21, %22 : vector<10x128xf32>
    %cst_20 = arith.constant 0.000000e+00 : f32
    %24 = vector.broadcast %cst_20 : f32 to vector<10x128xf32>
    %25 = arith.maximumf %23, %24 : vector<10x128xf32>
    %cst_21 = arith.constant dense<0.000000e+00> : vector<5x128xf32>
    %26 = tpu.matmul %6, %25, %cst_21 {dimension_numbers = #tpu.dot_dimension_numbers<[1], [0], [0], [1], [0, 0, 1, 1], [], []>} : vector<5x10xf32>, vector<10x128xf32>, vector<5x128xf32> -> vector<5x128xf32>
    %27 = vector.broadcast %7 : vector<5x1xf32> to vector<5x128xf32>
    %28 = arith.addf %26, %27 : vector<5x128xf32>
    %cst_22 = arith.constant 0.000000e+00 : f32
    %29 = vector.broadcast %cst_22 : f32 to vector<5x128xf32>
    %30 = arith.maximumf %28, %29 : vector<5x128xf32>
    %31 = vector.broadcast %8 : vector<5x1xf32> to vector<5x128xf32>
    %32 = arith.mulf %31, %30 : vector<5x128xf32>
    %cst_23 = arith.constant dense<0.000000e+00> : vector<128xf32>
    %33 = vector.multi_reduction <add>, %32, %cst_23 [0] : vector<5x128xf32> to vector<128xf32>
    %34 = vector.shape_cast %33 : vector<128xf32> to vector<1x128xf32>
    %35 = vector.broadcast %9 : vector<1x1xf32> to vector<1x128xf32>
    %36 = arith.addf %34, %35 : vector<1x128xf32>
    %cst_24 = arith.constant 0.000000e+00 : f32
    %37 = vector.broadcast %cst_24 : f32 to vector<1x128xf32>
    %38 = arith.subf %37, %36 : vector<1x128xf32>
    %39 = math.exp %38 : vector<1x128xf32>
    %cst_25 = arith.constant 1.000000e+00 : f32
    %40 = vector.broadcast %cst_25 : f32 to vector<1x128xf32>
    %41 = arith.addf %40, %39 : vector<1x128xf32>
    %42 = tpu.reciprocal %41 : vector<1x128xf32> -> vector<1x128xf32>
    %c0_26 = arith.constant 0 : index
    %c0_27 = arith.constant 0 : index
    %43 = vector.load %arg3[%c0_26, %c0_27] : memref<1x128xf32, #tpu.memory_space<vmem>>, vector<1x128xf32>
    tpu.vector_store %arg3[%c0_26, %c0_27], %42 {strides = array<i32>} : memref<1x128xf32, #tpu.memory_space<vmem>>, vector<1x128xf32>,
    return
  }
  func.func @transform_0(%arg0: i32) -> (i32, i32) {
    %c0_i32 = arith.constant 0 : i32
    %c0_i32_0 = arith.constant 0 : i32
    return %c0_i32, %arg0 : i32, i32
  }
  func.func @transform_1(%arg0: i32) -> (i32, i32) {
    %c0_i32 = arith.constant 0 : i32
    %c0_i32_0 = arith.constant 0 : i32
    %c0_i32_1 = arith.constant 0 : i32
    return %c0_i32, %c0_i32_0 : i32, i32
  }
  func.func @transform_2(%arg0: i32) -> (i32, i32) {
    %c0_i32 = arith.constant 0 : i32
    %c0_i32_0 = arith.constant 0 : i32
    return %c0_i32, %arg0 : i32, i32
  }
}

</mosaic_0001>

<llo_original>
// kernel: policy_forward.1
$region0: #{policy_forward.1}
  #allocation0 [shape = 'u32[]', space=smem, size = 0x4, offset = 0x4, fixed_abs, tag = 'smem constant byte address 0x4 - core index']
  #allocation1 [shape = 'u32[144,128]{1,0:T(1,128)}', space=vmem, size = 0x12000, scoped, tag = 'internal scratch']
  %s0 = inlined_call_operand.vmem [shape: f32[4,128], index: 0, kind: input, shape index: {}]
  %s1 = inlined_call_operand.hbm [shape: f32[72,128], index: 1, kind: input, shape index: {}]
  %s2 = inlined_call_operand.vmem [shape: f32[1,128], index: 2, kind: output, shape index: {}]
  %s3 = sld [smem:[#allocation0]]
  $region22: #{policy_forward.1} parent=0
    _
  %s5 = ssub.s32 1, %s3
  %s6 = scalar_select 0, %s5, %s3
  $region1: #{policy_forward.1} parent=0
    #allocation2 [shape = 'u8[36864]{0}', space=vmem, size = 0x9000, scoped, tag = 'input window, operand 1, single buffered']
    #allocation3 [shape = 's32[1]{0}', space=sflag, size = 0x4, scoped, tag = 'scoped memory for policy_forward.1']
    %7 = vsyncpa [#allocation3], 0
    // Predicated region
    $region2: #{policy_forward.1} parent=1 // pred_check
      _
    $region3: #{policy_forward.1} parent=1 // pred_check_branch
      %9 = sbr.rel (0) target = $region5
    $region4: #{policy_forward.1} parent=1 // pred_region
      _
    $region5: #{policy_forward.1} parent=1 // pred_fallthru
      _
    // Predicated region
    $region6: #{policy_forward.1} parent=1 // pred_check
      _
    $region7: #{policy_forward.1} parent=1 // pred_check_branch
      %11 = sbr.rel (0) target = $region9
    $region8: #{policy_forward.1} parent=1 // pred_region
      %s13 = ssub.s32 1152, 1152
      %14 = vsyncadd [#allocation3], %s13
      %s15 = sshll.u32 [#allocation2], 4
      %s16 = int_to_ptr.vmem [resolvable:$true] %s15
      %21 = dma.hbm_to_vmem [thread:$0]  %s1, 1152, %s16, [#allocation3], 128, 128, 8
    $region9: #{policy_forward.1} parent=1 // pred_fallthru
      _
    // Predicated region
    $region10: #{policy_forward.1} parent=1 // pred_check
      _
    $region11: #{policy_forward.1} parent=1 // pred_check_branch
      %23 = sbr.rel (0) target = $region13
    $region12: #{policy_forward.1} parent=1 // pred_region
      %24 = dma.done [#allocation3], 1152
    $region13: #{policy_forward.1} parent=1 // pred_fallthru
      _
    %v25 = vld [vmem:[#allocation2] sm:$0xff]
    %v26 = vld [vmem:[#allocation2 + $0x8] sm:$0x3]
    %v27 = vld [vmem:[#allocation2 + $0x10] sm:$0xff]
    %v28 = vld [vmem:[#allocation2 + $0x18] sm:$0xff]
    %v29 = vld [vmem:[#allocation2 + $0x20] sm:$0xf]
    %v30 = vld [vmem:[#allocation2 + $0x28] sm:$0xff]
    %v31 = vld [vmem:[#allocation2 + $0x30] sm:$0x3]
    %v32 = vld [vmem:[#allocation2 + $0x38] sm:$0x1f]
    %v33 = vld [vmem:[#allocation2 + $0x40] sm:$0x1f]
    %v34 = vld [vmem:[#allocation2 + $0x40] sm:$0x1]
    %v35 = vld [vmem:[%s0] sm:$0xf]
    %37 = vset.pattern.permute.xlu0 120
    %38 = vperm.xlu0 %37, %v25
    %v39 = vpop.permute.xlu0 %38
    %42 = vset.pattern.permute.xlu0 120
    %43 = vperm.xlu0 %42, %v26
    %v44 = vpop.permute.xlu0 %43
    %vm46 = vcmask 31744
    %v47 = vsel %vm46, %v25, 0
    %v49 = vsel %vm46, %v26, 0
    %vm51 = vcmask 1043456
    %v53 = vsel %vm51, %v35, 0
    %55 = vmatprep.subr.mxu0 0.0
    %56 = vmatpush1.msra.mxu0 0.0
    %57 = vmatprep.subr.mxu0 0.0
    %58 = vmatpush1.msra.mxu0 0.0
    %59 = vmatprep.subr.mxu0 0.0
    %60 = vmatpush1.msra.mxu0 0.0
    %61 = vmatprep.subr.mxu0 0.0
    %62 = vmatpush1.msra.mxu0 0.0
    %63 = vmatprep.subr.mxu0 0.0
    %64 = vmatpush1.msra.mxu0 0.0
    %65 = vmatprep.subr.mxu0 0.0
    %66 = vmatpush1.msra.mxu0 0.0
    %67 = vmatprep.subr.mxu0 0.0
    %68 = vmatpush1.msra.mxu0 0.0
    %69 = vmatprep.subr.mxu0 0.0
    %70 = vmatpush1.msra.mxu0 0.0
    %71 = vmatprep.subr.mxu0 0.0
    %72 = vmatpush1.msra.mxu0 0.0
    %73 = vmatprep.subr.mxu0 0.0
    %74 = vmatpush1.msra.mxu0 0.0
    %75 = vmatprep.subr.mxu0 0.0
    %76 = vmatpush1.msra.mxu0 0.0
    %77 = vmatprep.subr.mxu0 0.0
    %78 = vmatpush1.msra.mxu0 0.0
    %79 = vmatprep.subr.mxu0 0.0
    %80 = vmatpush1.msra.mxu0 0.0
    %81 = vmatprep.subr.mxu0 0.0
    %82 = vmatpush1.msra.mxu0 0.0
    %83 = vmatprep.subr.mxu0 0.0
    %84 = vmatpush1.msra.mxu0 0.0
    %85 = vmatprep.subr.mxu0 0.0
    %86 = vmatpush1.msra.mxu0 %v53
    %87 = vmatprep.subr.mxu0 0.0
    %88 = vmatpush2.msra.mxu0 0.0
    %89 = vmatprep.subr.mxu0 0.0
    %90 = vmatpush2.msra.mxu0 0.0
    %91 = vmatprep.subr.mxu0 0.0
    %92 = vmatpush2.msra.mxu0 0.0
    %93 = vmatprep.subr.mxu0 0.0
    %94 = vmatpush2.msra.mxu0 0.0
    %95 = vmatprep.subr.mxu0 0.0
    %96 = vmatpush2.msra.mxu0 0.0
    %97 = vmatprep.subr.mxu0 0.0
    %98 = vmatpush2.msra.mxu0 0.0
    %99 = vmatprep.subr.mxu0 0.0
    %100 = vmatpush2.msra.mxu0 0.0
    %101 = vmatprep.subr.mxu0 0.0
    %102 = vmatpush2.msra.mxu0 0.0
    %103 = vmatprep.subr.mxu0 0.0
    %104 = vmatpush2.msra.mxu0 0.0
    %105 = vmatprep.subr.mxu0 0.0
    %106 = vmatpush2.msra.mxu0 0.0
    %107 = vmatprep.subr.mxu0 0.0
    %108 = vmatpush2.msra.mxu0 0.0
    %109 = vmatprep.subr.mxu0 0.0
    %110 = vmatpush2.msra.mxu0 0.0
    %111 = vmatprep.subr.mxu0 0.0
    %112 = vmatpush2.msra.mxu0 0.0
    %113 = vmatprep.subr.mxu0 0.0
    %114 = vmatpush2.msra.mxu0 0.0
    %115 = vmatprep.subr.mxu0 0.0
    %116 = vmatpush2.msra.mxu0 0.0
    %117 = vmatprep.subr.mxu0 0.0
    %118 = vmatpush2.msra.mxu0 0.0
    %119 = vmatprep.mubr.f32.mxu0 0.0
    %120 = vmatmul.mubr.f32.gmra.mxu0 %v47
    %v121 = vpop.f32.mrf.mxu0
    %v122 = vadd.f32 %v39, %v121
    %v123 = vpop.f32.mrf.mxu0
    %124 = vmatprep.mubr.f32.mxu0 0.0
    %125 = vmatmul.mubr.f32.gmra.mxu0 %v49
    %v126 = vpop.f32.mrf.mxu0
    %v127 = vadd.f32 %v44, %v126
    %v128 = vpop.f32.mrf.mxu0
    %129 = vdwg.mxu0
    %v130 = vmax.f32 %v122, 0.0
    %v131 = vmax.f32 %v127, 0.0
    %133 = vset.pattern.permute.xlu0 120
    %134 = vperm.xlu0 %133, %v27
    %v135 = vpop.permute.xlu0 %134
    %138 = vset.pattern.permute.xlu0 120
    %139 = vperm.xlu0 %138, %v28
    %v140 = vpop.permute.xlu0 %139
    %143 = vset.pattern.permute.xlu0 120
    %144 = vperm.xlu0 %143, %v29
    %v145 = vpop.permute.xlu0 %144
    %vm147 = vcmask 80896
    %v148 = vsel %vm147, %v27, 0
    %v150 = vsel %vm147, %v28, 0
    %v152 = vsel %vm147, %v29, 0
    %vm154 = vcmask 1041408
    %v156 = vsel %vm154, %v131, 0
    %158 = vmatprep.subr.mxu0 0.0
    %159 = vmatpush1.msra.mxu0 0.0
    %160 = vmatprep.subr.mxu0 0.0
    %161 = vmatpush1.msra.mxu0 0.0
    %162 = vmatprep.subr.mxu0 0.0
    %163 = vmatpush1.msra.mxu0 0.0
    %164 = vmatprep.subr.mxu0 0.0
    %165 = vmatpush1.msra.mxu0 0.0
    %166 = vmatprep.subr.mxu0 0.0
    %167 = vmatpush1.msra.mxu0 0.0
    %168 = vmatprep.subr.mxu0 0.0
    %169 = vmatpush1.msra.mxu0 0.0
    %170 = vmatprep.subr.mxu0 0.0
    %171 = vmatpush1.msra.mxu0 0.0
    %172 = vmatprep.subr.mxu0 0.0
    %173 = vmatpush1.msra.mxu0 0.0
    %174 = vmatprep.subr.mxu0 0.0
    %175 = vmatpush1.msra.mxu0 0.0
    %176 = vmatprep.subr.mxu0 0.0
    %177 = vmatpush1.msra.mxu0 0.0
    %178 = vmatprep.subr.mxu0 0.0
    %179 = vmatpush1.msra.mxu0 0.0
    %180 = vmatprep.subr.mxu0 0.0
    %181 = vmatpush1.msra.mxu0 0.0
    %182 = vmatprep.subr.mxu0 0.0
    %183 = vmatpush1.msra.mxu0 0.0
    %184 = vmatprep.subr.mxu0 0.0
    %185 = vmatpush1.msra.mxu0 0.0
    %186 = vmatprep.subr.mxu0 0.0
    %187 = vmatpush1.msra.mxu0 %v156
    %188 = vmatprep.subr.mxu0 0.0
    %189 = vmatpush1.msra.mxu0 %v130
    %190 = vmatprep.subr.mxu0 0.0
    %191 = vmatpush2.msra.mxu0 0.0
    %192 = vmatprep.subr.mxu0 0.0
    %193 = vmatpush2.msra.mxu0 0.0
    %194 = vmatprep.subr.mxu0 0.0
    %195 = vmatpush2.msra.mxu0 0.0
    %196 = vmatprep.subr.mxu0 0.0
    %197 = vmatpush2.msra.mxu0 0.0
    %198 = vmatprep.subr.mxu0 0.0
    %199 = vmatpush2.msra.mxu0 0.0
    %200 = vmatprep.subr.mxu0 0.0
    %201 = vmatpush2.msra.mxu0 0.0
    %202 = vmatprep.subr.mxu0 0.0
    %203 = vmatpush2.msra.mxu0 0.0
    %204 = vmatprep.subr.mxu0 0.0
    %205 = vmatpush2.msra.mxu0 0.0
    %206 = vmatprep.subr.mxu0 0.0
    %207 = vmatpush2.msra.mxu0 0.0
    %208 = vmatprep.subr.mxu0 0.0
    %209 = vmatpush2.msra.mxu0 0.0
    %210 = vmatprep.subr.mxu0 0.0
    %211 = vmatpush2.msra.mxu0 0.0
    %212 = vmatprep.subr.mxu0 0.0
    %213 = vmatpush2.msra.mxu0 0.0
    %214 = vmatprep.subr.mxu0 0.0
    %215 = vmatpush2.msra.mxu0 0.0
    %216 = vmatprep.subr.mxu0 0.0
    %217 = vmatpush2.msra.mxu0 0.0
    %218 = vmatprep.subr.mxu0 0.0
    %219 = vmatpush2.msra.mxu0 0.0
    %220 = vmatprep.subr.mxu0 0.0
    %221 = vmatpush2.msra.mxu0 0.0
    %222 = vmatprep.mubr.f32.mxu0 0.0
    %223 = vmatmul.mubr.f32.gmra.mxu0 %v148
    %v224 = vpop.f32.mrf.mxu0
    %v225 = vadd.f32 %v135, %v224
    %v226 = vpop.f32.mrf.mxu0
    %227 = vmatprep.mubr.f32.mxu0 0.0
    %228 = vmatmul.mubr.f32.gmra.mxu0 %v150
    %v229 = vpop.f32.mrf.mxu0
    %v230 = vadd.f32 %v140, %v229
    %v231 = vpop.f32.mrf.mxu0
    %232 = vmatprep.mubr.f32.mxu0 0.0
    %233 = vmatmul.mubr.f32.gmra.mxu0 %v152
    %v234 = vpop.f32.mrf.mxu0
    %v235 = vadd.f32 %v145, %v234
    %v236 = vpop.f32.mrf.mxu0
    %237 = vdwg.mxu0
    %v238 = vmax.f32 %v225, 0.0
    %v239 = vmax.f32 %v230, 0.0
    %v240 = vmax.f32 %v235, 0.0
    %242 = vset.pattern.permute.xlu0 120
    %243 = vperm.xlu0 %242, %v30
    %v244 = vpop.permute.xlu0 %243
    %247 = vset.pattern.permute.xlu0 120
    %248 = vperm.xlu0 %247, %v31
    %v249 = vpop.permute.xlu0 %248
    %vm251 = vcmask 162816
    %v252 = vsel %vm251, %v30, 0
    %v254 = vsel %vm251, %v31, 0
    %v257 = vsel %vm51, %v240, 0
    %259 = vmatprep.subr.mxu0 0.0
    %260 = vmatpush1.msra.mxu0 0.0
    %261 = vmatprep.subr.mxu0 0.0
    %262 = vmatpush1.msra.mxu0 0.0
    %263 = vmatprep.subr.mxu0 0.0
    %264 = vmatpush1.msra.mxu0 0.0
    %265 = vmatprep.subr.mxu0 0.0
    %266 = vmatpush1.msra.mxu0 0.0
    %267 = vmatprep.subr.mxu0 0.0
    %268 = vmatpush1.msra.mxu0 0.0
    %269 = vmatprep.subr.mxu0 0.0
    %270 = vmatpush1.msra.mxu0 0.0
    %271 = vmatprep.subr.mxu0 0.0
    %272 = vmatpush1.msra.mxu0 0.0
    %273 = vmatprep.subr.mxu0 0.0
    %274 = vmatpush1.msra.mxu0 0.0
    %275 = vmatprep.subr.mxu0 0.0
    %276 = vmatpush1.msra.mxu0 0.0
    %277 = vmatprep.subr.mxu0 0.0
    %278 = vmatpush1.msra.mxu0 0.0
    %279 = vmatprep.subr.mxu0 0.0
    %280 = vmatpush1.msra.mxu0 0.0
    %281 = vmatprep.subr.mxu0 0.0
    %282 = vmatpush1.msra.mxu0 0.0
    %283 = vmatprep.subr.mxu0 0.0
    %284 = vmatpush1.msra.mxu0 0.0
    %285 = vmatprep.subr.mxu0 0.0
    %286 = vmatpush1.msra.mxu0 %v257
    %287 = vmatprep.subr.mxu0 0.0
    %288 = vmatpush1.msra.mxu0 %v239
    %289 = vmatprep.subr.mxu0 0.0
    %290 = vmatpush1.msra.mxu0 %v238
    %291 = vmatprep.subr.mxu0 0.0
    %292 = vmatpush2.msra.mxu0 0.0
    %293 = vmatprep.subr.mxu0 0.0
    %294 = vmatpush2.msra.mxu0 0.0
    %295 = vmatprep.subr.mxu0 0.0
    %296 = vmatpush2.msra.mxu0 0.0
    %297 = vmatprep.subr.mxu0 0.0
    %298 = vmatpush2.msra.mxu0 0.0
    %299 = vmatprep.subr.mxu0 0.0
    %300 = vmatpush2.msra.mxu0 0.0
    %301 = vmatprep.subr.mxu0 0.0
    %302 = vmatpush2.msra.mxu0 0.0
    %303 = vmatprep.subr.mxu0 0.0
    %304 = vmatpush2.msra.mxu0 0.0
    %305 = vmatprep.subr.mxu0 0.0
    %306 = vmatpush2.msra.mxu0 0.0
    %307 = vmatprep.subr.mxu0 0.0
    %308 = vmatpush2.msra.mxu0 0.0
    %309 = vmatprep.subr.mxu0 0.0
    %310 = vmatpush2.msra.mxu0 0.0
    %311 = vmatprep.subr.mxu0 0.0
    %312 = vmatpush2.msra.mxu0 0.0
    %313 = vmatprep.subr.mxu0 0.0
    %314 = vmatpush2.msra.mxu0 0.0
    %315 = vmatprep.subr.mxu0 0.0
    %316 = vmatpush2.msra.mxu0 0.0
    %317 = vmatprep.subr.mxu0 0.0
    %318 = vmatpush2.msra.mxu0 0.0
    %319 = vmatprep.subr.mxu0 0.0
    %320 = vmatpush2.msra.mxu0 0.0
    %321 = vmatprep.subr.mxu0 0.0
    %322 = vmatpush2.msra.mxu0 0.0
    %323 = vmatprep.mubr.f32.mxu0 0.0
    %324 = vmatmul.mubr.f32.gmra.mxu0 %v252
    %v325 = vpop.f32.mrf.mxu0
    %v326 = vadd.f32 %v244, %v325
    %v327 = vpop.f32.mrf.mxu0
    %328 = vmatprep.mubr.f32.mxu0 0.0
    %329 = vmatmul.mubr.f32.gmra.mxu0 %v254
    %v330 = vpop.f32.mrf.mxu0
    %v331 = vadd.f32 %v249, %v330
    %v332 = vpop.f32.mrf.mxu0
    %333 = vdwg.mxu0
    %v334 = vmax.f32 %v326, 0.0
    %v335 = vmax.f32 %v331, 0.0
    %337 = vset.pattern.permute.xlu0 120
    %338 = vperm.xlu0 %337, %v32
    %v339 = vpop.permute.xlu0 %338
    %v341 = vsel %vm147, %v32, 0
    %v344 = vsel %vm154, %v335, 0
    %346 = vmatprep.subr.mxu0 0.0
    %347 = vmatpush1.msra.mxu0 0.0
    %348 = vmatprep.subr.mxu0 0.0
    %349 = vmatpush1.msra.mxu0 0.0
    %350 = vmatprep.subr.mxu0 0.0
    %351 = vmatpush1.msra.mxu0 0.0
    %352 = vmatprep.subr.mxu0 0.0
    %353 = vmatpush1.msra.mxu0 0.0
    %354 = vmatprep.subr.mxu0 0.0
    %355 = vmatpush1.msra.mxu0 0.0
    %356 = vmatprep.subr.mxu0 0.0
    %357 = vmatpush1.msra.mxu0 0.0
    %358 = vmatprep.subr.mxu0 0.0
    %359 = vmatpush1.msra.mxu0 0.0
    %360 = vmatprep.subr.mxu0 0.0
    %361 = vmatpush1.msra.mxu0 0.0
    %362 = vmatprep.subr.mxu0 0.0
    %363 = vmatpush1.msra.mxu0 0.0
    %364 = vmatprep.subr.mxu0 0.0
    %365 = vmatpush1.msra.mxu0 0.0
    %366 = vmatprep.subr.mxu0 0.0
    %367 = vmatpush1.msra.mxu0 0.0
    %368 = vmatprep.subr.mxu0 0.0
    %369 = vmatpush1.msra.mxu0 0.0
    %370 = vmatprep.subr.mxu0 0.0
    %371 = vmatpush1.msra.mxu0 0.0
    %372 = vmatprep.subr.mxu0 0.0
    %373 = vmatpush1.msra.mxu0 0.0
    %374 = vmatprep.subr.mxu0 0.0
    %375 = vmatpush1.msra.mxu0 %v344
    %376 = vmatprep.subr.mxu0 0.0
    %377 = vmatpush1.msra.mxu0 %v334
    %378 = vmatprep.subr.mxu0 0.0
    %379 = vmatpush2.msra.mxu0 0.0
    %380 = vmatprep.subr.mxu0 0.0
    %381 = vmatpush2.msra.mxu0 0.0
    %382 = vmatprep.subr.mxu0 0.0
    %383 = vmatpush2.msra.mxu0 0.0
    %384 = vmatprep.subr.mxu0 0.0
    %385 = vmatpush2.msra.mxu0 0.0
    %386 = vmatprep.subr.mxu0 0.0
    %387 = vmatpush2.msra.mxu0 0.0
    %388 = vmatprep.subr.mxu0 0.0
    %389 = vmatpush2.msra.mxu0 0.0
    %390 = vmatprep.subr.mxu0 0.0
    %391 = vmatpush2.msra.mxu0 0.0
    %392 = vmatprep.subr.mxu0 0.0
    %393 = vmatpush2.msra.mxu0 0.0
    %394 = vmatprep.subr.mxu0 0.0
    %395 = vmatpush2.msra.mxu0 0.0
    %396 = vmatprep.subr.mxu0 0.0
    %397 = vmatpush2.msra.mxu0 0.0
    %398 = vmatprep.subr.mxu0 0.0
    %399 = vmatpush2.msra.mxu0 0.0
    %400 = vmatprep.subr.mxu0 0.0
    %401 = vmatpush2.msra.mxu0 0.0
    %402 = vmatprep.subr.mxu0 0.0
    %403 = vmatpush2.msra.mxu0 0.0
    %404 = vmatprep.subr.mxu0 0.0
    %405 = vmatpush2.msra.mxu0 0.0
    %406 = vmatprep.subr.mxu0 0.0
    %407 = vmatpush2.msra.mxu0 0.0
    %408 = vmatprep.subr.mxu0 0.0
    %409 = vmatpush2.msra.mxu0 0.0
    %410 = vmatprep.mubr.f32.mxu0 0.0
    %411 = vmatmul.mubr.f32.gmra.mxu0 %v341
    %v412 = vpop.f32.mrf.mxu0
    %v413 = vadd.f32 %v339, %v412
    %v414 = vpop.f32.mrf.mxu0
    %415 = vdwg.mxu0
    %v416 = vmax.f32 %v413, 0.0
    %418 = vset.pattern.permute.xlu0 0
    %419 = vperm.xlu0 %418, %v33
    %v420 = vpop.permute.xlu0 %419
    %v422 = vmul.f32 %v420, %v416
    %vm423 = vcmask 1044480
    %v424 = vsel %vm423, %v422, 0.0
    %v425 = vrot.slane %v424, 4
    %v426 = vadd.f32 %v424, %v425
    %v427 = vrot.slane %v426, 2
    %v428 = vadd.f32 %v426, %v427
    %v429 = vrot.slane %v428, 1
    %v430 = vadd.f32 %v428, %v429
    %432 = vset.pattern.permute.xlu0 120
    %433 = vperm.xlu0 %432, %v34
    %v434 = vpop.permute.xlu0 %433
    %v436 = vadd.f32 %v430, %v434
    %v437 = vsub.f32 0.0, %v436
    %v438 = vmul.f32 %v437, 1.442695
    %v439 = vpow.pop %v438
    %v440 = vadd.f32 %v439, 1.0
    %v441 = vrcp.pop %v440
    %442 = vst [vmem:[%s2] sm:$0x1] %v441
    // Predicated region
    $region14: #{policy_forward.1} parent=1 // pred_check
      _
    $region15: #{policy_forward.1} parent=1 // pred_check_branch
      %444 = sbr.rel (0) target = $region17
    $region16: #{policy_forward.1} parent=1 // pred_region
      _
    $region17: #{policy_forward.1} parent=1 // pred_fallthru
      _
    // Predicated region
    $region18: #{policy_forward.1} parent=1 // pred_check
      _
    $region19: #{policy_forward.1} parent=1 // pred_check_branch
      %446 = sbr.rel (0) target = $region21
    $region20: #{policy_forward.1} parent=1 // pred_region
      _
    $region21: #{policy_forward.1} parent=1 // pred_fallthru
      _
    %447 = vsyncpa [#allocation3], 1

</llo_original>
